<compile_context>
chip_gen: v7x
topology: tpu7x:2x2x1
jax: 0.10.0
libtpu: 0.0.40
codegen_flags: <defaults>
</compile_context>

<pallas_src>
import math

import jax
import jax.numpy as jnp
from jax.experimental import pallas as pl
from jax.experimental.pallas import tpu as pltpu


def _critic_kernel(x1_ref, x2_ref, w1_ref, b1_ref, w2_ref, b2_ref, o1_ref, o2_ref):
    """One batch-tile: both branches via lane-packed W1 / block-diagonal W2."""
    tm = x1_ref.shape[0]
    out = o1_ref.shape[1]

    # (2*TM, INP): rows [0, TM) = inp1 tile, rows [TM, 2*TM) = inp2 tile.
    x = jnp.concatenate([x1_ref[...], x2_ref[...]], axis=0)

    # Layer 1: one 128-lane matmul computes both branches' hidden states.
    h = jnp.dot(x, w1_ref[...], preferred_element_type=jnp.float32)   # (2TM, 2H)
    h = jnp.maximum(h + b1_ref[...], 0.0)

    # Layer 2: block-diagonal W2 keeps the branches independent.
    y = jnp.dot(h, w2_ref[...], preferred_element_type=jnp.float32)   # (2TM, 2OUT)
    y = jnp.maximum(y + b2_ref[...], 0.0)

    # Branch 1 output lives in rows [:TM], cols [:OUT]; branch 2 in rows [TM:],
    # cols [OUT:].  The other quadrants are cross-branch garbage and dropped.
    o1_ref[...] = y[:tm, :out].astype(o1_ref.dtype)
    o2_ref[...] = y[tm:, out:].astype(o2_ref.dtype)


def _round_up(x, m):
    return ((x + m - 1) // m) * m


def _pick_batch_tile(B):
    # Sublane-aligned tile, whole batch in one step when it fits.  Capped at
    # 2048 rows: per-step blocks (x: 2 x TM x 32, out: 2 x TM x 16, h: 2TM x 128,
    # all f32, double-buffered) stay at a few MiB — inside v7x's 32 MiB scoped
    # VMEM default — while amortizing the ~0.35 us fixed per-step cost.
    return min(_round_up(B, 8), 2048)


def single_phi_critic_forward(packed, inp1, inp2):
    """Matches SinglePhiCritic.forward: returns (x1, x2). Single pallas_call."""
    B, INP = inp1.shape
    H2 = packed["w1"].shape[1]          # 2 * hid
    O2 = packed["w2"].shape[1]          # 2 * out
    OUT = O2 // 2

    TM = _pick_batch_tile(B)
    Bp = _round_up(B, TM)
    if Bp != B:                          # pad remainder rows (sliced off below)
        inp1 = jnp.pad(inp1, ((0, Bp - B), (0, 0)))
        inp2 = jnp.pad(inp2, ((0, Bp - B), (0, 0)))

    grid = (Bp // TM,)

    o1, o2 = pl.pallas_call(
        _critic_kernel,
        out_shape=(jax.ShapeDtypeStruct((Bp, OUT), inp1.dtype),
                   jax.ShapeDtypeStruct((Bp, OUT), inp1.dtype)),
        grid=grid,
        in_specs=[
            pl.BlockSpec((TM, INP), lambda i: (i, 0)),   # inp1 tile
            pl.BlockSpec((TM, INP), lambda i: (i, 0)),   # inp2 tile
            pl.BlockSpec((INP, H2), lambda i: (0, 0)),   # packed W1 (resident)
            pl.BlockSpec((1, H2), lambda i: (0, 0)),     # packed b1
            pl.BlockSpec((H2, O2), lambda i: (0, 0)),    # block-diag W2
            pl.BlockSpec((1, O2), lambda i: (0, 0)),     # packed b2
        ],
        out_specs=(pl.BlockSpec((TM, OUT), lambda i: (i, 0)),
                   pl.BlockSpec((TM, OUT), lambda i: (i, 0))),
        compiler_params=pltpu.CompilerParams(
            dimension_semantics=("parallel",)),
    )(inp1, inp2, packed["w1"], packed["b1"], packed["w2"], packed["b2"])

    if Bp != B:
        o1, o2 = o1[:B], o2[:B]
    return o1, o2


# ----------------------------- init / packing -------------------------------

def xavier_uniform(key, fan_in, fan_out, dtype=jnp.float32):
    """torch.nn.init.xavier_uniform_ with gain=1, stored as (fan_in, fan_out)."""
    bound = math.sqrt(6.0 / (fan_in + fan_out))
    return jax.random.uniform(key, (fan_in, fan_out), dtype,
                              minval=-bound, maxval=bound)


def init_single_phi_critic(key, inp, hid, out, dtype=jnp.float32):
    """Per-layer params mirroring the PyTorch module (linear1/2 = Q1, linear4/5 = Q2)."""
    k1, k2, k4, k5 = jax.random.split(key, 4)
    return {
        "linear1_w": xavier_uniform(k1, inp, hid, dtype),
        "linear1_b": jnp.zeros((hid,), dtype),
        "linear2_w": xavier_uniform(k2, hid, out, dtype),
        "linear2_b": jnp.zeros((out,), dtype),
        "linear4_w": xavier_uniform(k4, inp, hid, dtype),
        "linear4_b": jnp.zeros((hid,), dtype),
        "linear5_w": xavier_uniform(k5, hid, out, dtype),
        "linear5_b": jnp.zeros((out,), dtype),
    }


def pack_single_phi_critic(params):
    """One-time packing: W1 lane-concat (INP, 2H); W2 block-diagonal (2H, 2OUT)."""
    hid = params["linear1_w"].shape[1]
    out = params["linear2_w"].shape[1]
    dt = params["linear1_w"].dtype
    w1 = jnp.concatenate([params["linear1_w"], params["linear4_w"]], axis=1)
    b1 = jnp.concatenate([params["linear1_b"], params["linear4_b"]])[None, :]
    w2 = jnp.zeros((2 * hid, 2 * out), dt)
    w2 = w2.at[:hid, :out].set(params["linear2_w"])
    w2 = w2.at[hid:, out:].set(params["linear5_w"])
    b2 = jnp.concatenate([params["linear2_b"], params["linear5_b"]])[None, :]
    return {"w1": w1, "b1": b1, "w2": w2, "b2": b2}


# ------------------------------- reference ----------------------------------

def _reference(params, inp1, inp2):
    h1 = jnp.maximum(inp1 @ params["linear1_w"] + params["linear1_b"], 0.0)
    x1 = jnp.maximum(h1 @ params["linear2_w"] + params["linear2_b"], 0.0)
    h2 = jnp.maximum(inp2 @ params["linear4_w"] + params["linear4_b"], 0.0)
    x2 = jnp.maximum(h2 @ params["linear5_w"] + params["linear5_b"], 0.0)
    return x1, x2


if __name__ == "__main__":
    key = jax.random.PRNGKey(0)
    k_p, k_x1, k_x2 = jax.random.split(key, 3)

    # Small shapes consistent with the module: batch=8, inp=32, hid=64, out=16.
    B, INP, HID, OUT = 8, 32, 64, 16
    params = init_single_phi_critic(k_p, INP, HID, OUT)
    packed = pack_single_phi_critic(params)          # one-off packing cost
    inp1 = jax.random.normal(k_x1, (B, INP), jnp.float32)
    inp2 = jax.random.normal(k_x2, (B, INP), jnp.float32)

    fwd = jax.jit(single_phi_critic_forward)
    x1, x2 = fwd(packed, inp1, inp2)
    jax.block_until_ready((x1, x2))

    r1, r2 = _reference(params, inp1, inp2)
    assert x1.shape == (B, OUT) and x2.shape == (B, OUT)
    assert jnp.allclose(x1, r1, atol=1e-5, rtol=1e-5)
    assert jnp.allclose(x2, r2, atol=1e-5, rtol=1e-5)

    print("KERNEL_OK")
</pallas_src>

<mosaic_0001>
module attributes {stable_mosaic.version = 11 : i64} {
  func.func @_critic_kernel(%arg0: i32, %arg1: memref<8x32xf32, #tpu.memory_space<vmem>>, %arg2: memref<8x32xf32, #tpu.memory_space<vmem>>, %arg3: memref<32x128xf32, #tpu.memory_space<vmem>>, %arg4: memref<1x128xf32, #tpu.memory_space<vmem>>, %arg5: memref<128x32xf32, #tpu.memory_space<vmem>>, %arg6: memref<1x32xf32, #tpu.memory_space<vmem>>, %arg7: memref<8x16xf32, #tpu.memory_space<vmem>>, %arg8: memref<8x16xf32, #tpu.memory_space<vmem>>) attributes {dimension_semantics = [#tpu.dimension_semantics<parallel>], iteration_bounds = array<i64: 1>, scalar_prefetch = 0 : i64, scratch_operands = 0 : i64, tpu.core_type = #tpu.core_type<tc>, window_params = [{transform_indices = @transform_0, window_bounds = array<i64: 8, 32>}, {transform_indices = @transform_1, window_bounds = array<i64: 8, 32>}, {pipeline_mode = #tpu.pipeline_mode<synchronous>, transform_indices = @transform_2, window_bounds = array<i64: 32, 128>}, {pipeline_mode = #tpu.pipeline_mode<synchronous>, transform_indices = @transform_3, window_bounds = array<i64: 1, 128>}, {pipeline_mode = #tpu.pipeline_mode<synchronous>, transform_indices = @transform_4, window_bounds = array<i64: 128, 32>}, {pipeline_mode = #tpu.pipeline_mode<synchronous>, transform_indices = @transform_5, window_bounds = array<i64: 1, 32>}, {transform_indices = @transform_6, window_bounds = array<i64: 8, 16>}, {transform_indices = @transform_7, window_bounds = array<i64: 8, 16>}]} {
    %c0 = arith.constant 0 : index
    %c0_0 = arith.constant 0 : index
    %0 = vector.load %arg1[%c0, %c0_0] : memref<8x32xf32, #tpu.memory_space<vmem>>, vector<8x32xf32>
    %c0_1 = arith.constant 0 : index
    %c0_2 = arith.constant 0 : index
    %1 = vector.load %arg2[%c0_1, %c0_2] : memref<8x32xf32, #tpu.memory_space<vmem>>, vector<8x32xf32>
    %2 = tpu.concatenate %0, %1 in 0 : vector<8x32xf32>, vector<8x32xf32> -> vector<16x32xf32>
    %c0_3 = arith.constant 0 : index
    %c0_4 = arith.constant 0 : index
    %3 = vector.load %arg3[%c0_3, %c0_4] : memref<32x128xf32, #tpu.memory_space<vmem>>, vector<32x128xf32>
    %cst = arith.constant dense<0.000000e+00> : vector<16x128xf32>
    %4 = tpu.matmul %2, %3, %cst {dimension_numbers = #tpu.dot_dimension_numbers<[1], [0], [0], [1], [0, 0, 1, 1], [], []>} : vector<16x32xf32>, vector<32x128xf32>, vector<16x128xf32> -> vector<16x128xf32>
    %c0_5 = arith.constant 0 : index
    %c0_6 = arith.constant 0 : index
    %5 = vector.load %arg4[%c0_5, %c0_6] : memref<1x128xf32, #tpu.memory_space<vmem>>, vector<1x128xf32>
    %6 = vector.broadcast %5 : vector<1x128xf32> to vector<16x128xf32>
    %7 = arith.addf %4, %6 : vector<16x128xf32>
    %cst_7 = arith.constant 0.000000e+00 : f32
    %8 = vector.broadcast %cst_7 : f32 to vector<16x128xf32>
    %9 = arith.maximumf %7, %8 : vector<16x128xf32>
    %c0_8 = arith.constant 0 : index
    %c0_9 = arith.constant 0 : index
    %10 = vector.load %arg5[%c0_8, %c0_9] : memref<128x32xf32, #tpu.memory_space<vmem>>, vector<128x32xf32>
    %cst_10 = arith.constant dense<0.000000e+00> : vector<16x32xf32>
    %11 = tpu.matmul %9, %10, %cst_10 {dimension_numbers = #tpu.dot_dimension_numbers<[1], [0], [0], [1], [0, 0, 1, 1], [], []>} : vector<16x128xf32>, vector<128x32xf32>, vector<16x32xf32> -> vector<16x32xf32>
    %c0_11 = arith.constant 0 : index
    %c0_12 = arith.constant 0 : index
    %12 = vector.load %arg6[%c0_11, %c0_12] : memref<1x32xf32, #tpu.memory_space<vmem>>, vector<1x32xf32>
    %13 = vector.broadcast %12 : vector<1x32xf32> to vector<16x32xf32>
    %14 = arith.addf %11, %13 : vector<16x32xf32>
    %cst_13 = arith.constant 0.000000e+00 : f32
    %15 = vector.broadcast %cst_13 : f32 to vector<16x32xf32>
    %16 = arith.maximumf %14, %15 : vector<16x32xf32>
    %17 = vector.extract_strided_slice %16 {offsets = [0, 0], sizes = [8, 16], strides = [1, 1]} : vector<16x32xf32> to vector<8x16xf32>
    %c0_14 = arith.constant 0 : index
    %c0_15 = arith.constant 0 : index
    %18 = vector.load %arg7[%c0_14, %c0_15] : memref<8x16xf32, #tpu.memory_space<vmem>>, vector<8x16xf32>
    tpu.vector_store %arg7[%c0_14, %c0_15], %17 {strides = array<i32>} : memref<8x16xf32, #tpu.memory_space<vmem>>, vector<8x16xf32>,
    %19 = vector.extract_strided_slice %16 {offsets = [8, 16], sizes = [8, 16], strides = [1, 1]} : vector<16x32xf32> to vector<8x16xf32>
    %c0_16 = arith.constant 0 : index
    %c0_17 = arith.constant 0 : index
    %20 = vector.load %arg8[%c0_16, %c0_17] : memref<8x16xf32, #tpu.memory_space<vmem>>, vector<8x16xf32>
    tpu.vector_store %arg8[%c0_16, %c0_17], %19 {strides = array<i32>} : memref<8x16xf32, #tpu.memory_space<vmem>>, vector<8x16xf32>,
    return
  }
  func.func @transform_0(%arg0: i32) -> (i32, i32) {
    %c0_i32 = arith.constant 0 : i32
    %c0_i32_0 = arith.constant 0 : i32
    return %arg0, %c0_i32 : i32, i32
  }
  func.func @transform_1(%arg0: i32) -> (i32, i32) {
    %c0_i32 = arith.constant 0 : i32
    %c0_i32_0 = arith.constant 0 : i32
    return %arg0, %c0_i32 : i32, i32
  }
  func.func @transform_2(%arg0: i32) -> (i32, i32) {
    %c0_i32 = arith.constant 0 : i32
    %c0_i32_0 = arith.constant 0 : i32
    %c0_i32_1 = arith.constant 0 : i32
    return %c0_i32, %c0_i32_0 : i32, i32
  }
  func.func @transform_3(%arg0: i32) -> (i32, i32) {
    %c0_i32 = arith.constant 0 : i32
    %c0_i32_0 = arith.constant 0 : i32
    %c0_i32_1 = arith.constant 0 : i32
    return %c0_i32, %c0_i32_0 : i32, i32
  }
  func.func @transform_4(%arg0: i32) -> (i32, i32) {
    %c0_i32 = arith.constant 0 : i32
    %c0_i32_0 = arith.constant 0 : i32
    %c0_i32_1 = arith.constant 0 : i32
    return %c0_i32, %c0_i32_0 : i32, i32
  }
  func.func @transform_5(%arg0: i32) -> (i32, i32) {
    %c0_i32 = arith.constant 0 : i32
    %c0_i32_0 = arith.constant 0 : i32
    %c0_i32_1 = arith.constant 0 : i32
    return %c0_i32, %c0_i32_0 : i32, i32
  }
  func.func @transform_6(%arg0: i32) -> (i32, i32) {
    %c0_i32 = arith.constant 0 : i32
    %c0_i32_0 = arith.constant 0 : i32
    return %arg0, %c0_i32 : i32, i32
  }
  func.func @transform_7(%arg0: i32) -> (i32, i32) {
    %c0_i32 = arith.constant 0 : i32
    %c0_i32_0 = arith.constant 0 : i32
    return %arg0, %c0_i32 : i32, i32
  }
}

</mosaic_0001>

<llo_original>
// kernel: single_phi_critic_forward.1
$region0: #{single_phi_critic_forward.1}
  #allocation0 [shape = 'u32[]', space=smem, size = 0x4, offset = 0x4, fixed_abs, tag = 'smem constant byte address 0x4 - core index']
  #allocation1 [shape = 'u32[144,128]{1,0:T(1,128)}', space=vmem, size = 0x12000, scoped, tag = 'internal scratch']
  %s0 = inlined_call_operand.vmem [shape: f32[8,32], index: 0, kind: input, shape index: {}]
  %s1 = inlined_call_operand.vmem [shape: f32[8,32], index: 1, kind: input, shape index: {}]
  %s2 = inlined_call_operand.vmem [shape: f32[32,128], index: 2, kind: input, shape index: {}]
  %s3 = inlined_call_operand.vmem [shape: f32[1,128], index: 3, kind: input, shape index: {}]
  %s4 = inlined_call_operand.vmem [shape: f32[128,32], index: 4, kind: input, shape index: {}]
  %s5 = inlined_call_operand.vmem [shape: f32[1,32], index: 5, kind: input, shape index: {}]
  %s6 = inlined_call_operand.hbm [shape: f32[8,16], index: 6, kind: output, shape index: {0}]
  %s7 = inlined_call_operand.hbm [shape: f32[8,16], index: 7, kind: output, shape index: {1}]
  %8 = xla_tuple %s6, %s7
  %s9 = sld [smem:[#allocation0]]
  $region42: #{single_phi_critic_forward.1} parent=0
    _
  %s11 = ssub.s32 1, %s9
  %s12 = scalar_select 0, %s11, %s9
  $region1: #{single_phi_critic_forward.1} parent=0
    #allocation2 [shape = 'u8[4096]{0}', space=vmem, size = 0x1000, scoped, tag = 'output window, operand 0, single buffered']
    #allocation3 [shape = 's32[1]{0}', space=sflag, size = 0x4, scoped, tag = 'scoped memory for single_phi_critic_forward.1']
    #allocation4 [shape = 'u8[4096]{0}', space=vmem, size = 0x1000, scoped, tag = 'output window, operand 1, single buffered']
    #allocation5 [shape = 's32[1]{0}', space=sflag, size = 0x4, scoped, tag = 'scoped memory for single_phi_critic_forward.1']
    %13 = vsyncpa [#allocation3], 0
    %14 = vsyncpa [#allocation5], 0
    // Predicated region
    $region2: #{single_phi_critic_forward.1} parent=1 // pred_check
      _
    $region3: #{single_phi_critic_forward.1} parent=1 // pred_check_branch
      %16 = sbr.rel (0) target = $region5
    $region4: #{single_phi_critic_forward.1} parent=1 // pred_region
      _
    $region5: #{single_phi_critic_forward.1} parent=1 // pred_fallthru
      _
    // Predicated region
    $region6: #{single_phi_critic_forward.1} parent=1 // pred_check
      _
    $region7: #{single_phi_critic_forward.1} parent=1 // pred_check_branch
      %18 = sbr.rel (0) target = $region9
    $region8: #{single_phi_critic_forward.1} parent=1 // pred_region
      _
    $region9: #{single_phi_critic_forward.1} parent=1 // pred_fallthru
      _
    // Predicated region
    $region10: #{single_phi_critic_forward.1} parent=1 // pred_check
      _
    $region11: #{single_phi_critic_forward.1} parent=1 // pred_check_branch
      %20 = sbr.rel (0) target = $region13
    $region12: #{single_phi_critic_forward.1} parent=1 // pred_region
      _
    $region13: #{single_phi_critic_forward.1} parent=1 // pred_fallthru
      _
    // Predicated region
    $region14: #{single_phi_critic_forward.1} parent=1 // pred_check
      _
    $region15: #{single_phi_critic_forward.1} parent=1 // pred_check_branch
      %22 = sbr.rel (0) target = $region17
    $region16: #{single_phi_critic_forward.1} parent=1 // pred_region
      _
    $region17: #{single_phi_critic_forward.1} parent=1 // pred_fallthru
      _
    // Predicated region
    $region18: #{single_phi_critic_forward.1} parent=1 // pred_check
      _
    $region19: #{single_phi_critic_forward.1} parent=1 // pred_check_branch
      %24 = sbr.rel (0) target = $region21
    $region20: #{single_phi_critic_forward.1} parent=1 // pred_region
      _
    $region21: #{single_phi_critic_forward.1} parent=1 // pred_fallthru
      _
    // Predicated region
    $region22: #{single_phi_critic_forward.1} parent=1 // pred_check
      _
    $region23: #{single_phi_critic_forward.1} parent=1 // pred_check_branch
      %26 = sbr.rel (0) target = $region25
    $region24: #{single_phi_critic_forward.1} parent=1 // pred_region
      _
    $region25: #{single_phi_critic_forward.1} parent=1 // pred_fallthru
      _
    %v27 = vld [vmem:[%s0] sm:$0xff]
    %v28 = vld [vmem:[%s1] sm:$0xff]
    %v29 = vld [vmem:[%s2] sm:$0xff]
    %v30 = vld [vmem:[%s2 + $0x8] sm:$0xff]
    %v31 = vld [vmem:[%s2 + $0x10] sm:$0xff]
    %v32 = vld [vmem:[%s2 + $0x18] sm:$0xff]
    %v33 = vld [vmem:[%s3] sm:$0x1]
    %v35 = vlaneseq
    %v36 = vshrl.u32 %v35, 7
    %v37 = vsub.s32 0, %v36
    %v38 = vrot.slane %v33, %v37
    %vm40 = vcmask 261120
    %v42 = vsel %vm40, %v27, 0
    %v45 = vsel %vm40, %v28, 0
    %47 = vmatprep.subr.mxu0 0.0
    %48 = vmatpush1.msra.mxu0 %v29
    %49 = vmatprep.subr.mxu0 0.0
    %50 = vmatpush1.msra.mxu0 %v30
    %51 = vmatprep.subr.mxu0 0.0
    %52 = vmatpush1.msra.mxu0 %v31
    %53 = vmatprep.subr.mxu0 0.0
    %54 = vmatpush1.msra.mxu0 %v32
    %55 = vmatprep.subr.mxu0 0.0
    %56 = vmatpush1.msra.mxu0 0.0
    %57 = vmatprep.subr.mxu0 0.0
    %58 = vmatpush1.msra.mxu0 0.0
    %59 = vmatprep.subr.mxu0 0.0
    %60 = vmatpush1.msra.mxu0 0.0
    %61 = vmatprep.subr.mxu0 0.0
    %62 = vmatpush1.msra.mxu0 0.0
    %63 = vmatprep.subr.mxu0 0.0
    %64 = vmatpush1.msra.mxu0 0.0
    %65 = vmatprep.subr.mxu0 0.0
    %66 = vmatpush1.msra.mxu0 0.0
    %67 = vmatprep.subr.mxu0 0.0
    %68 = vmatpush1.msra.mxu0 0.0
    %69 = vmatprep.subr.mxu0 0.0
    %70 = vmatpush1.msra.mxu0 0.0
    %71 = vmatprep.subr.mxu0 0.0
    %72 = vmatpush1.msra.mxu0 0.0
    %73 = vmatprep.subr.mxu0 0.0
    %74 = vmatpush1.msra.mxu0 0.0
    %75 = vmatprep.subr.mxu0 0.0
    %76 = vmatpush1.msra.mxu0 0.0
    %77 = vmatprep.subr.mxu0 0.0
    %78 = vmatpush1.msra.mxu0 0.0
    %79 = vmatprep.subr.mxu0 0.0
    %80 = vmatpush1.msra.mxu0 0.0
    %81 = vmatprep.subr.mxu0 0.0
    %82 = vmatpush1.msra.mxu0 0.0
    %83 = vmatprep.subr.mxu0 0.0
    %84 = vmatpush1.msra.mxu0 0.0
    %85 = vmatprep.subr.mxu0 0.0
    %86 = vmatpush1.msra.mxu0 0.0
    %87 = vmatprep.subr.mxu0 0.0
    %88 = vmatpush1.msra.mxu0 0.0
    %89 = vmatprep.subr.mxu0 0.0
    %90 = vmatpush1.msra.mxu0 0.0
    %91 = vmatprep.subr.mxu0 0.0
    %92 = vmatpush1.msra.mxu0 0.0
    %93 = vmatprep.subr.mxu0 0.0
    %94 = vmatpush1.msra.mxu0 0.0
    %95 = vmatprep.subr.mxu0 0.0
    %96 = vmatpush1.msra.mxu0 0.0
    %97 = vmatprep.subr.mxu0 0.0
    %98 = vmatpush1.msra.mxu0 0.0
    %99 = vmatprep.subr.mxu0 0.0
    %100 = vmatpush1.msra.mxu0 0.0
    %101 = vmatprep.subr.mxu0 0.0
    %102 = vmatpush1.msra.mxu0 0.0
    %103 = vmatprep.subr.mxu0 0.0
    %104 = vmatpush1.msra.mxu0 0.0
    %105 = vmatprep.subr.mxu0 0.0
    %106 = vmatpush1.msra.mxu0 0.0
    %107 = vmatprep.subr.mxu0 0.0
    %108 = vmatpush1.msra.mxu0 0.0
    %109 = vmatprep.subr.mxu0 0.0
    %110 = vmatpush1.msra.mxu0 0.0
    %111 = vmatprep.mubr.f32.mxu0 0.0
    %112 = vmatmul.mubr.f32.gmra.mrb[0].mxu0 %v42
    %v113 = vpop.f32.mrb[0].mxu0
    %v114 = vadd.f32 %v38, %v113
    %v115 = vpop.f32.mrb[0].mxu0
    %116 = vmatprep.mubr.f32.mxu0 0.0
    %117 = vmatmul.mubr.f32.gmra.mrb[0].mxu0 %v45
    %v118 = vpop.f32.mrb[0].mxu0
    %v119 = vadd.f32 %v38, %v118
    %v120 = vpop.f32.mrb[0].mxu0
    %121 = vdwg.mxu0
    %v122 = vmax.f32 %v114, 0.0
    %v123 = vmax.f32 %v119, 0.0
    %v124 = vld [vmem:[%s4] sm:$0xff]
    %v125 = vld [vmem:[%s4 + $0x8] sm:$0xff]
    %v126 = vld [vmem:[%s4 + $0x10] sm:$0xff]
    %v127 = vld [vmem:[%s4 + $0x18] sm:$0xff]
    %v128 = vld [vmem:[%s4 + $0x20] sm:$0xff]
    %v129 = vld [vmem:[%s4 + $0x28] sm:$0xff]
    %v130 = vld [vmem:[%s4 + $0x30] sm:$0xff]
    %v131 = vld [vmem:[%s4 + $0x38] sm:$0xff]
    %v132 = vld [vmem:[%s4 + $0x40] sm:$0xff]
    %v133 = vld [vmem:[%s4 + $0x48] sm:$0xff]
    %v134 = vld [vmem:[%s4 + $0x50] sm:$0xff]
    %v135 = vld [vmem:[%s4 + $0x58] sm:$0xff]
    %v136 = vld [vmem:[%s4 + $0x60] sm:$0xff]
    %v137 = vld [vmem:[%s4 + $0x68] sm:$0xff]
    %v138 = vld [vmem:[%s4 + $0x70] sm:$0xff]
    %v139 = vld [vmem:[%s4 + $0x78] sm:$0xff]
    %v140 = vld [vmem:[%s5] sm:$0x1]
    %v142 = vlaneseq
    %v143 = vshrl.u32 %v142, 7
    %v144 = vsub.s32 0, %v143
    %v145 = vrot.slane %v140, %v144
    %147 = vmatprep.subr.mxu0 0.0
    %148 = vmatpush1.msra.mxu0 %v124
    %149 = vmatprep.subr.mxu0 0.0
    %150 = vmatpush1.msra.mxu0 %v125
    %151 = vmatprep.subr.mxu0 0.0
    %152 = vmatpush1.msra.mxu0 %v126
    %153 = vmatprep.subr.mxu0 0.0
    %154 = vmatpush1.msra.mxu0 %v127
    %155 = vmatprep.subr.mxu0 0.0
    %156 = vmatpush1.msra.mxu0 %v128
    %157 = vmatprep.subr.mxu0 0.0
    %158 = vmatpush1.msra.mxu0 %v129
    %159 = vmatprep.subr.mxu0 0.0
    %160 = vmatpush1.msra.mxu0 %v130
    %161 = vmatprep.subr.mxu0 0.0
    %162 = vmatpush1.msra.mxu0 %v131
    %163 = vmatprep.subr.mxu0 0.0
    %164 = vmatpush1.msra.mxu0 %v132
    %165 = vmatprep.subr.mxu0 0.0
    %166 = vmatpush1.msra.mxu0 %v133
    %167 = vmatprep.subr.mxu0 0.0
    %168 = vmatpush1.msra.mxu0 %v134
    %169 = vmatprep.subr.mxu0 0.0
    %170 = vmatpush1.msra.mxu0 %v135
    %171 = vmatprep.subr.mxu0 0.0
    %172 = vmatpush1.msra.mxu0 %v136
    %173 = vmatprep.subr.mxu0 0.0
    %174 = vmatpush1.msra.mxu0 %v137
    %175 = vmatprep.subr.mxu0 0.0
    %176 = vmatpush1.msra.mxu0 %v138
    %177 = vmatprep.subr.mxu0 0.0
    %178 = vmatpush1.msra.mxu0 %v139
    %179 = vmatprep.subr.mxu0 0.0
    %180 = vmatpush1.msra.mxu0 0.0
    %181 = vmatprep.subr.mxu0 0.0
    %182 = vmatpush1.msra.mxu0 0.0
    %183 = vmatprep.subr.mxu0 0.0
    %184 = vmatpush1.msra.mxu0 0.0
    %185 = vmatprep.subr.mxu0 0.0
    %186 = vmatpush1.msra.mxu0 0.0
    %187 = vmatprep.subr.mxu0 0.0
    %188 = vmatpush1.msra.mxu0 0.0
    %189 = vmatprep.subr.mxu0 0.0
    %190 = vmatpush1.msra.mxu0 0.0
    %191 = vmatprep.subr.mxu0 0.0
    %192 = vmatpush1.msra.mxu0 0.0
    %193 = vmatprep.subr.mxu0 0.0
    %194 = vmatpush1.msra.mxu0 0.0
    %195 = vmatprep.subr.mxu0 0.0
    %196 = vmatpush1.msra.mxu0 0.0
    %197 = vmatprep.subr.mxu0 0.0
    %198 = vmatpush1.msra.mxu0 0.0
    %199 = vmatprep.subr.mxu0 0.0
    %200 = vmatpush1.msra.mxu0 0.0
    %201 = vmatprep.subr.mxu0 0.0
    %202 = vmatpush1.msra.mxu0 0.0
    %203 = vmatprep.subr.mxu0 0.0
    %204 = vmatpush1.msra.mxu0 0.0
    %205 = vmatprep.subr.mxu0 0.0
    %206 = vmatpush1.msra.mxu0 0.0
    %207 = vmatprep.subr.mxu0 0.0
    %208 = vmatpush1.msra.mxu0 0.0
    %209 = vmatprep.subr.mxu0 0.0
    %210 = vmatpush1.msra.mxu0 0.0
    %211 = vmatprep.mubr.f32.mxu0 0.0
    %212 = vmatmul.mubr.f32.gmra.mrb[0].mxu0 %v122
    %v213 = vpop.f32.mrb[0].mxu0
    %v214 = vadd.f32 %v145, %v213
    %v215 = vpop.f32.mrb[0].mxu0
    %216 = vmatprep.mubr.f32.mxu0 0.0
    %217 = vmatmul.mubr.f32.gmra.mrb[0].mxu0 %v123
    %v218 = vpop.f32.mrb[0].mxu0
    %v219 = vadd.f32 %v145, %v218
    %v220 = vpop.f32.mrb[0].mxu0
    %221 = vdwg.mxu0
    %v222 = vmax.f32 %v214, 0.0
    %v223 = vmax.f32 %v219, 0.0
    %vm224 = vcmask 130048
    %225 = vst.msk [vmem:[#allocation2] sm:$0xff] %vm224, %v222
    %227 = vrot.lane.b32.xlu0 %v223, 112
    %v228 = vpop.permute.xlu0 %227
    %230 = vst.msk [vmem:[#allocation4] sm:$0xff] %vm224, %v228
    // Predicated region
    $region26: #{single_phi_critic_forward.1} parent=1 // pred_check
      _
    $region27: #{single_phi_critic_forward.1} parent=1 // pred_check_branch
      %232 = sbr.rel (0) target = $region29
    $region28: #{single_phi_critic_forward.1} parent=1 // pred_region
      %s234 = ssub.s32 128, 128
      %235 = vsyncadd [#allocation3], %s234
      %s237 = sshll.u32 [#allocation2], 4
      %s238 = int_to_ptr.vmem [resolvable:$true] %s237
      %240 = dma.vmem_to_hbm [thread:$0]  %s238, 128, %s6, [#allocation3]
    $region29: #{single_phi_critic_forward.1} parent=1 // pred_fallthru
      _
    // Predicated region
    $region30: #{single_phi_critic_forward.1} parent=1 // pred_check
      _
    $region31: #{single_phi_critic_forward.1} parent=1 // pred_check_branch
      %242 = sbr.rel (0) target = $region33
    $region32: #{single_phi_critic_forward.1} parent=1 // pred_region
      %s244 = ssub.s32 128, 128
      %245 = vsyncadd [#allocation5], %s244
      %s247 = sshll.u32 [#allocation4], 4
      %s248 = int_to_ptr.vmem [resolvable:$true] %s247
      %250 = dma.vmem_to_hbm [thread:$0]  %s248, 128, %s7, [#allocation5]
    $region33: #{single_phi_critic_forward.1} parent=1 // pred_fallthru
      _
    // Predicated region
    $region34: #{single_phi_critic_forward.1} parent=1 // pred_check
      _
    $region35: #{single_phi_critic_forward.1} parent=1 // pred_check_branch
      %252 = sbr.rel (0) target = $region37
    $region36: #{single_phi_critic_forward.1} parent=1 // pred_region
      %253 = dma.done [#allocation3], 128
    $region37: #{single_phi_critic_forward.1} parent=1 // pred_fallthru
      _
    // Predicated region
    $region38: #{single_phi_critic_forward.1} parent=1 // pred_check
      _
    $region39: #{single_phi_critic_forward.1} parent=1 // pred_check_branch
      %255 = sbr.rel (0) target = $region41
    $region40: #{single_phi_critic_forward.1} parent=1 // pred_region
      %256 = dma.done [#allocation5], 128
    $region41: #{single_phi_critic_forward.1} parent=1 // pred_fallthru
      _
    %257 = vsyncpa [#allocation3], 1
    %258 = vsyncpa [#allocation5], 1

</llo_original>
